<compile_context>
chip_gen: v5e
topology: v5e:2x2
jax: 0.10.0
libtpu: 0.0.40
codegen_flags: <defaults>
</compile_context>

<pallas_src>
import jax
import jax.numpy as jnp
import numpy as np
from jax.experimental import pallas as pl
from jax.experimental.pallas import tpu as pltpu


def _round_up(a, b):
    return (a + b - 1) // b * b


def _pick_tiles(m, k, cout_pad, budget_bytes=12 << 20):
    """Largest (tm, tn) whose double-buffered working set fits in scoped VMEM.

    Budget is conservative (12 MiB) so the kernel stays inside the default
    scoped-VMEM limit on every current chip (v5e 16 MiB is the floor) without
    having to raise vmem_limit_bytes.
    """
    m8 = _round_up(m, 8)
    tm_cands = sorted({t for t in (512, 256, 128, 64, 32, 16, 8) if t <= m8}
                      | {min(m8, 512)}, reverse=True)
    tn_cands = [t for t in (512, 256, 128) if t <= cout_pad] or [cout_pad]
    for tm in tm_cands:
        for tn in tn_cands:
            need = 2 * (tm * k * 2      # x tile, bf16, double buffered
                        + k * tn * 2    # weight tile, bf16
                        + tn * 4        # bias tile, f32
                        + tm * tn * 4)  # output tile, f32
            if need <= budget_bytes:
                return tm, tn
    return 8, tn_cands[-1]


def _cconv_matmul_kernel(x_ref, w_ref, b_ref, o_ref):
    # x_ref: (TM, K)  bf16  im2col patches ([real|imag] channels x 9 taps)
    # w_ref: (K, TN)  bf16  packed complex weights (lane-dense, zero padded)
    # b_ref: (1, TN)  f32   packed complex bias (zero padded)
    # o_ref: (TM, TN) f32   lane-dense output tile
    o_ref[...] = (
        jnp.dot(x_ref[...], w_ref[...], preferred_element_type=jnp.float32)
        + b_ref[...]
    )


@jax.jit
def cdown2_forward(x, w_r, w_i, b_r, b_i):
    """x: (N, Cin, H, W) complex64 (NCHW). Returns (N, Cout, H_out, W_out) complex64."""
    n, c_in, h, w = x.shape
    c_out = w_r.shape[0]
    h_out = (h + 2 - 3) // 2 + 1
    w_out = (w + 2 - 3) // 2 + 1
    c2_in, c2_out = 2 * c_in, 2 * c_out
    k = 9 * c2_in
    m = n * h_out * w_out

    cout_pad = _round_up(c2_out, 128)
    tm, tn = _pick_tiles(m, k, cout_pad)
    cout_pad = _round_up(cout_pad, tn)      # make tn divide the padded width
    m_pad = _round_up(m, tm)

    # ---- glue: pack real/imag along channels, NCHW -> NHWC, cast to bf16 ----
    x_cat = jnp.concatenate([x.real, x.imag], axis=1)                  # (N,2Cin,H,W)
    x_cat = jnp.transpose(x_cat, (0, 2, 3, 1)).astype(jnp.bfloat16)    # (N,H,W,2Cin)

    # ---- glue: zero pad + im2col (3x3, stride 2) -> flat (M, 9*2Cin) slab ----
    x_pad = jnp.pad(x_cat, ((0, 0), (1, 2), (1, 2), (0, 0)))
    taps = []
    for kh in range(3):
        for kw in range(3):
            taps.append(x_pad[:, kh:kh + 2 * h_out:2, kw:kw + 2 * w_out:2, :])
    patches = jnp.stack(taps, axis=3)                                  # (N,Ho,Wo,9,2Cin)
    patches = patches.reshape(m, k)                                    # (M, K)
    if m_pad != m:
        patches = jnp.pad(patches, ((0, m_pad - m), (0, 0)))

    # ---- glue: pack complex weights into one lane-dense 2-D matmul weight ----
    wr = jnp.transpose(w_r, (2, 3, 1, 0)).astype(jnp.float32)          # (3,3,Cin,Cout)
    wi = jnp.transpose(w_i, (2, 3, 1, 0)).astype(jnp.float32)
    w_full = jnp.concatenate(
        [jnp.concatenate([wr, wi], axis=-1),      # rows fed by x_real
         jnp.concatenate([-wi, wr], axis=-1)],    # rows fed by x_imag
        axis=-2)                                                        # (3,3,2Cin,2Cout)
    w2d = w_full.reshape(k, c2_out)                                     # (K, 2Cout)
    w2d = jnp.pad(w2d, ((0, 0), (0, cout_pad - c2_out))).astype(jnp.bfloat16)

    b_full = jnp.concatenate([b_r - b_i, b_r + b_i]).astype(jnp.float32)
    b_full = jnp.pad(b_full, (0, cout_pad - c2_out)).reshape(1, cout_pad)

    out2d = pl.pallas_call(
        _cconv_matmul_kernel,
        out_shape=jax.ShapeDtypeStruct((m_pad, cout_pad), jnp.float32),
        grid_spec=pltpu.PrefetchScalarGridSpec(
            num_scalar_prefetch=0,
            grid=(m_pad // tm, cout_pad // tn),
            in_specs=[
                pl.BlockSpec((tm, k), lambda i, j: (i, 0)),
                pl.BlockSpec((k, tn), lambda i, j: (0, j)),
                pl.BlockSpec((1, tn), lambda i, j: (0, j)),
            ],
            out_specs=pl.BlockSpec((tm, tn), lambda i, j: (i, j)),
        ),
        compiler_params=pltpu.CompilerParams(
            dimension_semantics=("parallel", "parallel")),
    )(patches, w2d, b_full)

    # ---- glue: strip padding, split real/imag, back to complex NCHW ----
    out_cat = out2d[:m, :c2_out].reshape(n, h_out, w_out, c2_out)
    out = jax.lax.complex(out_cat[..., :c_out], out_cat[..., c_out:])   # (N,Ho,Wo,Cout)
    return jnp.transpose(out, (0, 3, 1, 2))                             # NCHW


def _ref_cdown2(x, w_r, w_i, b_r, b_i):
    """Plain-JAX f32 reference mirroring PyTorch ComplexConv2d semantics (NCHW)."""
    def conv(inp, w, b):
        y = jax.lax.conv_general_dilated(
            inp.astype(jnp.float32), w.astype(jnp.float32),
            window_strides=(2, 2), padding=((1, 1), (1, 1)),
            dimension_numbers=("NCHW", "OIHW", "NCHW"))
        return y + b.reshape(1, -1, 1, 1)

    xr, xi = jnp.real(x), jnp.imag(x)
    real = conv(xr, w_r, b_r) - conv(xi, w_i, b_i)
    imag = conv(xi, w_r, b_r) + conv(xr, w_i, b_i)
    return jax.lax.complex(real, imag)


if __name__ == "__main__":
    key = jax.random.PRNGKey(0)
    N, C_IN, C_OUT, H, W = 2, 4, 8, 16, 16

    k_xr, k_xi, k_wr, k_wi, k_br, k_bi = jax.random.split(key, 6)
    x = jax.lax.complex(
        jax.random.normal(k_xr, (N, C_IN, H, W), jnp.float32),
        jax.random.normal(k_xi, (N, C_IN, H, W), jnp.float32))

    # Deterministic parameter init (PyTorch Conv2d-style uniform bounds).
    fan_in = C_IN * 3 * 3
    bound = 1.0 / np.sqrt(fan_in)
    w_r = jax.random.uniform(k_wr, (C_OUT, C_IN, 3, 3), jnp.float32, -bound, bound)
    w_i = jax.random.uniform(k_wi, (C_OUT, C_IN, 3, 3), jnp.float32, -bound, bound)
    b_r = jax.random.uniform(k_br, (C_OUT,), jnp.float32, -bound, bound)
    b_i = jax.random.uniform(k_bi, (C_OUT,), jnp.float32, -bound, bound)

    out = cdown2_forward(x, w_r, w_i, b_r, b_i)
    out = jax.block_until_ready(out)

    ref = jax.block_until_ready(_ref_cdown2(x, w_r, w_i, b_r, b_i))
    assert out.shape == (N, C_OUT, H // 2, W // 2), out.shape
    # bf16 activations/weights in the kernel (f32 accumulation) -> wider tol.
    np.testing.assert_allclose(np.asarray(out), np.asarray(ref), rtol=2e-2, atol=2e-2)

    print("KERNEL_OK")
</pallas_src>

<mosaic_0001>
module attributes {stable_mosaic.version = 11 : i64} {
  func.func @_cconv_matmul_kernel(%arg0: i32, %arg1: i32, %arg2: memref<128x72xbf16, #tpu.memory_space<vmem>>, %arg3: memref<72x128xbf16, #tpu.memory_space<vmem>>, %arg4: memref<1x128xf32, #tpu.memory_space<vmem>>, %arg5: memref<128x128xf32, #tpu.memory_space<vmem>>) attributes {dimension_semantics = [#tpu.dimension_semantics<parallel>, #tpu.dimension_semantics<parallel>], iteration_bounds = array<i64: 1, 1>, scalar_prefetch = 0 : i64, scratch_operands = 0 : i64, tpu.core_type = #tpu.core_type<tc>, window_params = [{transform_indices = @transform_0, window_bounds = array<i64: 128, 72>}, {transform_indices = @transform_1, window_bounds = array<i64: 72, 128>}, {transform_indices = @transform_2, window_bounds = array<i64: 1, 128>}, {transform_indices = @transform_3, window_bounds = array<i64: 128, 128>}]} {
    %c0 = arith.constant 0 : index
    %c0_0 = arith.constant 0 : index
    %0 = vector.load %arg2[%c0, %c0_0] : memref<128x72xbf16, #tpu.memory_space<vmem>>, vector<128x72xbf16>
    %c0_1 = arith.constant 0 : index
    %c0_2 = arith.constant 0 : index
    %1 = vector.load %arg3[%c0_1, %c0_2] : memref<72x128xbf16, #tpu.memory_space<vmem>>, vector<72x128xbf16>
    %cst = arith.constant dense<0.000000e+00> : vector<128x128xf32>
    %2 = tpu.matmul %0, %1, %cst {dimension_numbers = #tpu.dot_dimension_numbers<[1], [0], [0], [1], [0, 0, 1, 1], [], []>} : vector<128x72xbf16>, vector<72x128xbf16>, vector<128x128xf32> -> vector<128x128xf32>
    %c0_3 = arith.constant 0 : index
    %c0_4 = arith.constant 0 : index
    %3 = vector.load %arg4[%c0_3, %c0_4] : memref<1x128xf32, #tpu.memory_space<vmem>>, vector<1x128xf32>
    %4 = vector.broadcast %3 : vector<1x128xf32> to vector<128x128xf32>
    %5 = arith.addf %2, %4 : vector<128x128xf32>
    %c0_5 = arith.constant 0 : index
    %c0_6 = arith.constant 0 : index
    %6 = vector.load %arg5[%c0_5, %c0_6] : memref<128x128xf32, #tpu.memory_space<vmem>>, vector<128x128xf32>
    tpu.vector_store %arg5[%c0_5, %c0_6], %5 {strides = array<i32>} : memref<128x128xf32, #tpu.memory_space<vmem>>, vector<128x128xf32>,
    return
  }
  func.func @transform_0(%arg0: i32, %arg1: i32) -> (i32, i32) {
    %c0_i32 = arith.constant 0 : i32
    %c0_i32_0 = arith.constant 0 : i32
    return %arg0, %c0_i32 : i32, i32
  }
  func.func @transform_1(%arg0: i32, %arg1: i32) -> (i32, i32) {
    %c0_i32 = arith.constant 0 : i32
    %c0_i32_0 = arith.constant 0 : i32
    return %c0_i32, %arg1 : i32, i32
  }
  func.func @transform_2(%arg0: i32, %arg1: i32) -> (i32, i32) {
    %c0_i32 = arith.constant 0 : i32
    %c0_i32_0 = arith.constant 0 : i32
    return %c0_i32, %arg1 : i32, i32
  }
  func.func @transform_3(%arg0: i32, %arg1: i32) -> (i32, i32) {
    %c0_i32 = arith.constant 0 : i32
    return %arg0, %arg1 : i32, i32
  }
}

</mosaic_0001>

<llo_original>
// kernel: custom-call.1
$region0: #{custom-call.1}
  %s0 = inlined_call_operand.hbm [shape: c64[2,4,16,16], index: 0, kind: input, shape index: {}]
  %s1 = inlined_call_operand.vmem [shape: f32[2,4,16,16], index: 1, kind: output, shape index: {}]
  %s2 = scalar_lea.hbm %s0, 128
  $region1: #{custom-call.1} parent=0
    #allocation0 [shape = 's32[1]{0}', space=sflag, size = 0x4, scoped, tag = 'scoped memory for custom-call.1']
    %3 = vsyncpa [#allocation0], 0
    %s5 = sshll.u32 %s2, 4
    %s6 = int_to_ptr.hbm [resolvable:$true] %s5
    %s7 = sshll.u32 %s1, 4
    %s8 = int_to_ptr.vmem [resolvable:$true] %s7
    %10 = dma.hbm_to_vmem [thread:$0]  %s6, 2048, %s8, [#allocation0]
    %12 = dma.done [#allocation0], 2048
    %13 = vsyncpa [#allocation0], 1

// kernel: custom-call
$region0: #{custom-call}
  %s0 = inlined_call_operand.hbm [shape: c64[2,4,16,16], index: 0, kind: input, shape index: {}]
  %s1 = inlined_call_operand.vmem [shape: f32[2,4,16,16], index: 1, kind: output, shape index: {}]
  $region1: #{custom-call} parent=0
    #allocation0 [shape = 's32[1]{0}', space=sflag, size = 0x4, scoped, tag = 'scoped memory for custom-call']
    %2 = vsyncpa [#allocation0], 0
    %s4 = sshll.u32 %s0, 4
    %s5 = int_to_ptr.hbm [resolvable:$true] %s4
    %s6 = sshll.u32 %s1, 4
    %s7 = int_to_ptr.vmem [resolvable:$true] %s6
    %9 = dma.hbm_to_vmem [thread:$0]  %s5, 2048, %s7, [#allocation0]
    %11 = dma.done [#allocation0], 2048
    %12 = vsyncpa [#allocation0], 1

// kernel: custom-call.2
$region0: #{custom-call.2}
  %s0 = inlined_call_operand.vmem [shape: f32[2,8,8,8], index: 0, kind: input, shape index: {}]
  %s1 = inlined_call_operand.vmem [shape: f32[2,8,8,8], index: 1, kind: input, shape index: {}]
  %s2 = inlined_call_operand.hbm [shape: c64[2,8,8,8], index: 2, kind: output, shape index: {}]
  %s3 = scalar_lea.hbm %s2, 128
  $region1: #{custom-call.2} parent=0
    #allocation0 [shape = 's32[1]{0}', space=sflag, size = 0x4, scoped, tag = 'scoped memory for custom-call.2']
    %4 = vsyncpa [#allocation0], 0
    %s6 = sshll.u32 %s0, 4
    %s7 = int_to_ptr.vmem [resolvable:$true] %s6
    %s8 = sshll.u32 %s2, 4
    %s9 = int_to_ptr.hbm [resolvable:$true] %s8
    %11 = dma.vmem_to_hbm [thread:$0]  %s7, 2048, %s9, [#allocation0]
    %13 = dma.done [#allocation0], 2048
    %14 = vsyncpa [#allocation0], 1
  $region2: #{custom-call.2} parent=0
    #allocation1 [shape = 's32[1]{0}', space=sflag, size = 0x4, scoped, tag = 'scoped memory for custom-call.2']
    %15 = vsyncpa [#allocation1], 0
    %s17 = sshll.u32 %s1, 4
    %s18 = int_to_ptr.vmem [resolvable:$true] %s17
    %s19 = sshll.u32 %s3, 4
    %s20 = int_to_ptr.hbm [resolvable:$true] %s19
    %22 = dma.vmem_to_hbm [thread:$0]  %s18, 2048, %s20, [#allocation1]
    %24 = dma.done [#allocation1], 2048
    %25 = vsyncpa [#allocation1], 1

// kernel: cdown2_forward.1
$region0: #{cdown2_forward.1}
  #allocation0 [shape = 'u32[]', space=smem, size = 0x4, offset = 0x4, fixed_abs, tag = 'smem constant byte address 0x4 - core index']
  #allocation1 [shape = 'u32[72,128]{1,0:T(1,128)}', space=vmem, size = 0x9000, scoped, tag = 'internal scratch']
  %s0 = inlined_call_operand.vmem [shape: bf16[128,72], index: 0, kind: input, shape index: {}]
  %s1 = inlined_call_operand.vmem [shape: bf16[72,128], index: 1, kind: input, shape index: {}]
  %s2 = inlined_call_operand.vmem [shape: f32[1,128], index: 2, kind: input, shape index: {}]
  %s3 = inlined_call_operand.vmem [shape: f32[128,128], index: 3, kind: output, shape index: {}]
  %s4 = sld [smem:[#allocation0]]
  $region22: #{cdown2_forward.1} parent=0
    _
  %s6 = ssub.s32 1, %s4
  %s7 = scalar_select 0, %s6, %s4
  // Predicated region
  $region2: #{cdown2_forward.1} parent=0 // pred_check
    _
  $region3: #{cdown2_forward.1} parent=0 // pred_check_branch
    %9 = sbr.rel (0) target = $region5
  $region4: #{cdown2_forward.1} parent=0 // pred_region
    _
  $region5: #{cdown2_forward.1} parent=0 // pred_fallthru
    _
  // Predicated region
  $region6: #{cdown2_forward.1} parent=0 // pred_check
    _
  $region7: #{cdown2_forward.1} parent=0 // pred_check_branch
    %11 = sbr.rel (0) target = $region9
  $region8: #{cdown2_forward.1} parent=0 // pred_region
    _
  $region9: #{cdown2_forward.1} parent=0 // pred_fallthru
    _
  // Predicated region
  $region10: #{cdown2_forward.1} parent=0 // pred_check
    _
  $region11: #{cdown2_forward.1} parent=0 // pred_check_branch
    %13 = sbr.rel (0) target = $region13
  $region12: #{cdown2_forward.1} parent=0 // pred_region
    _
  $region13: #{cdown2_forward.1} parent=0 // pred_fallthru
    _
  %v15 = vld [vmem:[%s0] sm:$0xf]
  %v16 = vld [vmem:[%s0 + $0x4] sm:$0xf]
  %v17 = vld [vmem:[%s0 + $0x8] sm:$0xf]
  %v18 = vld [vmem:[%s0 + $0xc] sm:$0xf]
  %v19 = vld [vmem:[%s0 + $0x10] sm:$0xf]
  %v20 = vld [vmem:[%s0 + $0x14] sm:$0xf]
  %v21 = vld [vmem:[%s0 + $0x18] sm:$0xf]
  %v22 = vld [vmem:[%s0 + $0x1c] sm:$0xf]
  %v23 = vld [vmem:[%s0 + $0x20] sm:$0xf]
  %v24 = vld [vmem:[%s0 + $0x24] sm:$0xf]
  %v25 = vld [vmem:[%s0 + $0x28] sm:$0xf]
  %v26 = vld [vmem:[%s0 + $0x2c] sm:$0xf]
  %v27 = vld [vmem:[%s0 + $0x30] sm:$0xf]
  %v28 = vld [vmem:[%s0 + $0x34] sm:$0xf]
  %v29 = vld [vmem:[%s0 + $0x38] sm:$0xf]
  %v30 = vld [vmem:[%s0 + $0x3c] sm:$0xf]
  %v31 = vld [vmem:[%s1] sm:$0xf]
  %v32 = vld [vmem:[%s1 + $0x4] sm:$0xf]
  %v33 = vld [vmem:[%s1 + $0x8] sm:$0xf]
  %v34 = vld [vmem:[%s1 + $0xc] sm:$0xf]
  %v35 = vld [vmem:[%s1 + $0x10] sm:$0xf]
  %v36 = vld [vmem:[%s1 + $0x14] sm:$0xf]
  %v37 = vld [vmem:[%s1 + $0x18] sm:$0xf]
  %v38 = vld [vmem:[%s1 + $0x1c] sm:$0xf]
  %v39 = vld [vmem:[%s1 + $0x20] sm:$0xf]
  %v40 = vld [vmem:[%s2] sm:$0x1]
  %v42 = vperm.slane %v40, 0
  %v60 = vunpack.c.l.b16 %v15
  %v61 = vunpack.c.l.b16 %v16
  %v62 = vunpack.c.l.b16 %v17
  %v63 = vunpack.c.l.b16 %v18
  %v64 = vunpack.c.l.b16 %v19
  %v65 = vunpack.c.l.b16 %v20
  %v66 = vunpack.c.l.b16 %v21
  %v67 = vunpack.c.l.b16 %v22
  %v68 = vunpack.c.l.b16 %v23
  %v69 = vunpack.c.l.b16 %v24
  %v70 = vunpack.c.l.b16 %v25
  %v71 = vunpack.c.l.b16 %v26
  %v72 = vunpack.c.l.b16 %v27
  %v73 = vunpack.c.l.b16 %v28
  %v74 = vunpack.c.l.b16 %v29
  %v75 = vunpack.c.l.b16 %v30
  %v76 = vpack.c.b16 %v61, %v60
  %v77 = vpack.c.b16 %v63, %v62
  %v78 = vpack.c.b16 %v65, %v64
  %v79 = vpack.c.b16 %v67, %v66
  %v80 = vpack.c.b16 %v69, %v68
  %v81 = vpack.c.b16 %v71, %v70
  %v82 = vpack.c.b16 %v73, %v72
  %v83 = vpack.c.b16 %v75, %v74
  %v93 = vunpack.c.l.b16 %v31
  %v94 = vunpack.c.l.b16 %v32
  %v95 = vunpack.c.l.b16 %v33
  %v96 = vunpack.c.l.b16 %v34
  %v97 = vunpack.c.l.b16 %v35
  %v98 = vunpack.c.l.b16 %v36
  %v99 = vunpack.c.l.b16 %v37
  %v100 = vunpack.c.l.b16 %v38
  %v101 = vunpack.c.l.b16 %v39
  %v102 = vpack.c.b16 %v94, %v93
  %v103 = vpack.c.b16 %v96, %v95
  %v104 = vpack.c.b16 %v98, %v97
  %v105 = vpack.c.b16 %v100, %v99
  %v106 = vpack.c.b16 %v101, %v101
  %vm111 = vcmask 588800
  %v113 = vsel %vm111, %v76, 0
  %v116 = vsel %vm111, %v77, 0
  %v119 = vsel %vm111, %v78, 0
  %v122 = vsel %vm111, %v79, 0
  %v125 = vsel %vm111, %v80, 0
  %v128 = vsel %vm111, %v81, 0
  %v131 = vsel %vm111, %v82, 0
  %v134 = vsel %vm111, %v83, 0
  %vm136 = vcmask 1043456
  %v138 = vsel %vm136, %v106, 0
  %140 = vmatpush.bf16.msra.mxu0 0
  %141 = vmatpush.bf16.msra.mxu0 0
  %142 = vmatpush.bf16.msra.mxu0 0
  %143 = vmatpush.bf16.msra.mxu0 %v138
  %144 = vmatpush.bf16.msra.mxu0 %v105
  %145 = vmatpush.bf16.msra.mxu0 %v104
  %146 = vmatpush.bf16.msra.mxu0 %v103
  %147 = vmatpush.bf16.msra.mxu0 %v102
  %148 = vmatmul.bf16.gmra.mxu0 %v113
  %v149 = vpop.f32.mrf.mxu0
  %v150 = vadd.f32 %v42, %v149
  %v151 = vpop.f32.mrf.mxu0
  %v152 = vadd.f32 %v42, %v151
  %153 = vmatmul.bf16.gmra.mxu0 %v116
  %v154 = vpop.f32.mrf.mxu0
  %v155 = vadd.f32 %v42, %v154
  %v156 = vpop.f32.mrf.mxu0
  %v157 = vadd.f32 %v42, %v156
  %158 = vmatmul.bf16.gmra.mxu0 %v119
  %v159 = vpop.f32.mrf.mxu0
  %v160 = vadd.f32 %v42, %v159
  %v161 = vpop.f32.mrf.mxu0
  %v162 = vadd.f32 %v42, %v161
  %163 = vmatmul.bf16.gmra.mxu0 %v122
  %v164 = vpop.f32.mrf.mxu0
  %v165 = vadd.f32 %v42, %v164
  %v166 = vpop.f32.mrf.mxu0
  %v167 = vadd.f32 %v42, %v166
  %168 = vmatmul.bf16.gmra.mxu0 %v125
  %v169 = vpop.f32.mrf.mxu0
  %v170 = vadd.f32 %v42, %v169
  %v171 = vpop.f32.mrf.mxu0
  %v172 = vadd.f32 %v42, %v171
  %173 = vmatmul.bf16.gmra.mxu0 %v128
  %v174 = vpop.f32.mrf.mxu0
  %v175 = vadd.f32 %v42, %v174
  %v176 = vpop.f32.mrf.mxu0
  %v177 = vadd.f32 %v42, %v176
  %178 = vmatmul.bf16.gmra.mxu0 %v131
  %v179 = vpop.f32.mrf.mxu0
  %v180 = vadd.f32 %v42, %v179
  %v181 = vpop.f32.mrf.mxu0
  %v182 = vadd.f32 %v42, %v181
  %183 = vmatmul.bf16.gmra.mxu0 %v134
  %v184 = vpop.f32.mrf.mxu0
  %v185 = vadd.f32 %v42, %v184
  %v186 = vpop.f32.mrf.mxu0
  %v187 = vadd.f32 %v42, %v186
  %188 = vdwg.mxu0
  %189 = vst [vmem:[%s3] sm:$0xff] %v150
  %190 = vst [vmem:[%s3 + $0x8] sm:$0xff] %v152
  %191 = vst [vmem:[%s3 + $0x10] sm:$0xff] %v155
  %192 = vst [vmem:[%s3 + $0x18] sm:$0xff] %v157
  %193 = vst [vmem:[%s3 + $0x20] sm:$0xff] %v160
  %194 = vst [vmem:[%s3 + $0x28] sm:$0xff] %v162
  %195 = vst [vmem:[%s3 + $0x30] sm:$0xff] %v165
  %196 = vst [vmem:[%s3 + $0x38] sm:$0xff] %v167
  %197 = vst [vmem:[%s3 + $0x40] sm:$0xff] %v170
  %198 = vst [vmem:[%s3 + $0x48] sm:$0xff] %v172
  %199 = vst [vmem:[%s3 + $0x50] sm:$0xff] %v175
  %200 = vst [vmem:[%s3 + $0x58] sm:$0xff] %v177
  %201 = vst [vmem:[%s3 + $0x60] sm:$0xff] %v180
  %202 = vst [vmem:[%s3 + $0x68] sm:$0xff] %v182
  %203 = vst [vmem:[%s3 + $0x70] sm:$0xff] %v185
  %204 = vst [vmem:[%s3 + $0x78] sm:$0xff] %v187
  // Predicated region
  $region14: #{cdown2_forward.1} parent=0 // pred_check
    _
  $region15: #{cdown2_forward.1} parent=0 // pred_check_branch
    %206 = sbr.rel (0) target = $region17
  $region16: #{cdown2_forward.1} parent=0 // pred_region
    _
  $region17: #{cdown2_forward.1} parent=0 // pred_fallthru
    _
  // Predicated region
  $region18: #{cdown2_forward.1} parent=0 // pred_check
    _
  $region19: #{cdown2_forward.1} parent=0 // pred_check_branch
    %208 = sbr.rel (0) target = $region21
  $region20: #{cdown2_forward.1} parent=0 // pred_region
    _
  $region21: #{cdown2_forward.1} parent=0 // pred_fallthru
    _

</llo_original>
